<compile_context>
chip_gen: v7x
topology: tpu7x:2x2x1
jax: 0.10.0
libtpu: 0.0.40
codegen_flags: <defaults>
</compile_context>

<pallas_src>
import functools
import math

import jax
import jax.numpy as jnp
from jax.experimental import pallas as pl
from jax.experimental.pallas import tpu as pltpu

ACT_DTYPE = jnp.bfloat16
MASK_VALUE = -1e30


def _pick_tile(full, pref):
    """Largest power-of-two-ish tile <= pref that divides `full` (or full itself)."""
    if full <= pref:
        return full
    t = pref
    while t > 1 and full % t != 0:
        t //= 2
    return t if full % t == 0 else full


def _cparams(*sem):
    return pltpu.CompilerParams(
        dimension_semantics=sem,
        vmem_limit_bytes=32 * 1024 * 1024,
    )


# ---------------------------------------------------------------------------
# RMSNorm
# ---------------------------------------------------------------------------
def _rmsnorm_kernel(x_ref, w_ref, o_ref, *, eps):
    x = x_ref[...].astype(jnp.float32)
    ms = jnp.mean(x * x, axis=-1, keepdims=True)
    o_ref[...] = (x * jax.lax.rsqrt(ms + eps)
                  * w_ref[...].astype(jnp.float32)).astype(o_ref.dtype)


def rmsnorm(x2, w_row, eps, tm):
    M, D = x2.shape
    return pl.pallas_call(
        functools.partial(_rmsnorm_kernel, eps=eps),
        out_shape=jax.ShapeDtypeStruct((M, D), x2.dtype),
        grid=(M // tm,),
        in_specs=[pl.BlockSpec((tm, D), lambda i: (i, 0)),
                  pl.BlockSpec((1, D), lambda i: (0, 0))],
        out_specs=pl.BlockSpec((tm, D), lambda i: (i, 0)),
        compiler_params=_cparams("parallel"),
    )(x2, w_row)


# ---------------------------------------------------------------------------
# Fused QKV projection: (M, D) x (D, (H+2*KVH)*hd) -> (B, H_total, S, hd)
# (head-major output layout produced directly by the out_spec index_map)
# ---------------------------------------------------------------------------
def _qkv_proj_kernel(x_ref, w_ref, o_ref, acc_ref, *, hpt, hd):
    @pl.when(pl.program_id(2) == 0)
    def _init():
        acc_ref[...] = jnp.zeros_like(acc_ref)

    acc_ref[...] += jnp.dot(x_ref[...], w_ref[...],
                            preferred_element_type=jnp.float32)

    @pl.when(pl.program_id(2) == pl.num_programs(2) - 1)
    def _done():
        acc = acc_ref[...]
        for hh in range(hpt):
            o_ref[hh] = acc[:, hh * hd:(hh + 1) * hd].astype(o_ref.dtype)


def qkv_proj(x2, w_qkv, B, S, hd, tm, tn, tk):
    M, D = x2.shape
    N = w_qkv.shape[1]
    h_total = N // hd
    hpt = tn // hd            # heads per N tile
    spb = S // tm             # seq-blocks per batch row
    grid = (M // tm, N // tn, D // tk)
    return pl.pallas_call(
        functools.partial(_qkv_proj_kernel, hpt=hpt, hd=hd),
        out_shape=jax.ShapeDtypeStruct((B, h_total, S, hd), x2.dtype),
        grid=grid,
        in_specs=[pl.BlockSpec((tm, tk), lambda i, j, k: (i, k)),
                  pl.BlockSpec((tk, tn), lambda i, j, k: (k, j))],
        out_specs=pl.BlockSpec((None, hpt, tm, hd),
                               lambda i, j, k: (i // spb, j, i % spb, 0)),
        scratch_shapes=[pltpu.VMEM((tm, tn), jnp.float32)],
        compiler_params=_cparams("parallel", "parallel", "arbitrary"),
    )(x2, w_qkv)


# ---------------------------------------------------------------------------
# Flash attention with in-kernel RoPE (rotate-half on de-interleaved q/k),
# in-kernel causal + sliding-window mask, online softmax, GQA via index_map.
# ---------------------------------------------------------------------------
def _flash_attn_kernel(q_ref, k_ref, v_ref, cq_ref, sq_ref, ck_ref, sk_ref,
                       o_ref, qrot_ref, m_ref, l_ref, acc_ref, *, hd, window):
    ki = pl.program_id(3)
    hd2 = hd // 2

    @pl.when(ki == 0)
    def _init():
        q = q_ref[...].astype(jnp.float32)
        q_half = jnp.concatenate([q[:, hd2:], q[:, :hd2]], axis=1)
        # softmax scale is folded into cq/sq (the q tables) by the wrapper
        qrot_ref[...] = (q * cq_ref[...] + q_half * sq_ref[...]
                         ).astype(qrot_ref.dtype)
        m_ref[...] = jnp.full(m_ref.shape, MASK_VALUE, m_ref.dtype)
        l_ref[...] = jnp.zeros_like(l_ref)
        acc_ref[...] = jnp.zeros_like(acc_ref)

    k = k_ref[...].astype(jnp.float32)
    k_half = jnp.concatenate([k[:, hd2:], k[:, :hd2]], axis=1)
    k_rot = (k * ck_ref[...] + k_half * sk_ref[...]).astype(k_ref.dtype)

    s = jax.lax.dot_general(qrot_ref[...], k_rot, (((1,), (1,)), ((), ())),
                            preferred_element_type=jnp.float32)  # (tq, tkv)

    tq, tkv = s.shape
    q_pos = pl.program_id(2) * tq + jax.lax.broadcasted_iota(
        jnp.int32, (tq, tkv), 0)
    k_pos = ki * tkv + jax.lax.broadcasted_iota(jnp.int32, (tq, tkv), 1)
    allowed = (k_pos <= q_pos) & (k_pos >= q_pos - window)
    s = jnp.where(allowed, s, MASK_VALUE)

    m_prev = m_ref[...]
    m_new = jnp.maximum(m_prev, jnp.max(s, axis=-1, keepdims=True))
    alpha = jnp.exp(m_prev - m_new)
    p = jnp.where(allowed, jnp.exp(s - m_new), 0.0)
    l_ref[...] = alpha * l_ref[...] + jnp.sum(p, axis=-1, keepdims=True)
    acc_ref[...] = alpha * acc_ref[...] + jnp.dot(
        p.astype(v_ref.dtype), v_ref[...], preferred_element_type=jnp.float32)
    m_ref[...] = m_new

    @pl.when(ki == pl.num_programs(3) - 1)
    def _done():
        inv_l = pl.reciprocal(l_ref[...], approx=True)
        o_ref[...] = (acc_ref[...] * inv_l).astype(o_ref.dtype)


def flash_attention(qkv4, cos_q, sin_q, cos_k, sin_k,
                    n_heads, n_kv_heads, window, tq, tkv):
    B, h_total, S, hd = qkv4.shape
    H, KVH = n_heads, n_kv_heads
    rep = H // KVH
    grid = (B, H, S // tq, S // tkv)

    q_map = lambda b, h, qi, ki: (b, h, qi, 0)
    k_map = lambda b, h, qi, ki: (b, H + h // rep, ki, 0)
    v_map = lambda b, h, qi, ki: (b, H + KVH + h // rep, ki, 0)

    return pl.pallas_call(
        functools.partial(_flash_attn_kernel, hd=hd, window=window),
        out_shape=jax.ShapeDtypeStruct((B, H, S, hd), qkv4.dtype),
        grid=grid,
        in_specs=[
            pl.BlockSpec((None, None, tq, hd), q_map),
            pl.BlockSpec((None, None, tkv, hd), k_map),
            pl.BlockSpec((None, None, tkv, hd), v_map),
            pl.BlockSpec((tq, hd), lambda b, h, qi, ki: (qi, 0)),
            pl.BlockSpec((tq, hd), lambda b, h, qi, ki: (qi, 0)),
            pl.BlockSpec((tkv, hd), lambda b, h, qi, ki: (ki, 0)),
            pl.BlockSpec((tkv, hd), lambda b, h, qi, ki: (ki, 0)),
        ],
        out_specs=pl.BlockSpec((None, None, tq, hd), q_map),
        scratch_shapes=[
            pltpu.VMEM((tq, hd), qkv4.dtype),   # rotated (scaled) q
            pltpu.VMEM((tq, 1), jnp.float32),   # running max
            pltpu.VMEM((tq, 1), jnp.float32),   # running denom
            pltpu.VMEM((tq, hd), jnp.float32),  # output accumulator
        ],
        compiler_params=_cparams("parallel", "parallel", "parallel",
                                 "arbitrary"),
    )(qkv4, qkv4, qkv4, cos_q, sin_q, cos_k, sin_k)


# ---------------------------------------------------------------------------
# Attention output projection (wo) reading the (B,H,S,hd) layout directly,
# with fused residual add.
# ---------------------------------------------------------------------------
def _attn_out_kernel(a_ref, w_ref, r_ref, o_ref, acc_ref, *, kpt, hd):
    @pl.when(pl.program_id(2) == 0)
    def _init():
        acc_ref[...] = jnp.zeros_like(acc_ref)

    for hh in range(kpt):
        acc_ref[...] += jnp.dot(a_ref[hh], w_ref[hh * hd:(hh + 1) * hd, :],
                                preferred_element_type=jnp.float32)

    @pl.when(pl.program_id(2) == pl.num_programs(2) - 1)
    def _done():
        o_ref[...] = (acc_ref[...]
                      + r_ref[...].astype(jnp.float32)).astype(o_ref.dtype)


def attn_out_proj(attn4, wo, resid2, tm, tn, kpt):
    B, H, S, hd = attn4.shape
    M, D = resid2.shape
    spb = S // tm
    grid = (M // tm, D // tn, H // kpt)
    return pl.pallas_call(
        functools.partial(_attn_out_kernel, kpt=kpt, hd=hd),
        out_shape=jax.ShapeDtypeStruct((M, D), resid2.dtype),
        grid=grid,
        in_specs=[
            pl.BlockSpec((None, kpt, tm, hd),
                         lambda i, j, k: (i // spb, k, i % spb, 0)),
            pl.BlockSpec((kpt * hd, tn), lambda i, j, k: (k, j)),
            pl.BlockSpec((tm, tn), lambda i, j, k: (i, j)),
        ],
        out_specs=pl.BlockSpec((tm, tn), lambda i, j, k: (i, j)),
        scratch_shapes=[pltpu.VMEM((tm, tn), jnp.float32)],
        compiler_params=_cparams("parallel", "parallel", "arbitrary"),
    )(attn4, wo, resid2)


# ---------------------------------------------------------------------------
# FFN: fused w1/w3 GEMM with SiLU gate epilogue.
# ---------------------------------------------------------------------------
def _ffn_gate_kernel(x_ref, w1_ref, w3_ref, o_ref, acc1_ref, acc3_ref):
    @pl.when(pl.program_id(2) == 0)
    def _init():
        acc1_ref[...] = jnp.zeros_like(acc1_ref)
        acc3_ref[...] = jnp.zeros_like(acc3_ref)

    x = x_ref[...]
    acc1_ref[...] += jnp.dot(x, w1_ref[...], preferred_element_type=jnp.float32)
    acc3_ref[...] += jnp.dot(x, w3_ref[...], preferred_element_type=jnp.float32)

    @pl.when(pl.program_id(2) == pl.num_programs(2) - 1)
    def _done():
        a = acc1_ref[...]
        gate = a * (1.0 / (1.0 + jnp.exp(-a)))     # SiLU (exp -> EUP slot)
        o_ref[...] = (gate * acc3_ref[...]).astype(o_ref.dtype)


def ffn_gate(x2, w1, w3, tm, tn, tk):
    M, D = x2.shape
    Hdim = w1.shape[1]
    grid = (M // tm, Hdim // tn, D // tk)
    return pl.pallas_call(
        _ffn_gate_kernel,
        out_shape=jax.ShapeDtypeStruct((M, Hdim), x2.dtype),
        grid=grid,
        in_specs=[pl.BlockSpec((tm, tk), lambda i, j, k: (i, k)),
                  pl.BlockSpec((tk, tn), lambda i, j, k: (k, j)),
                  pl.BlockSpec((tk, tn), lambda i, j, k: (k, j))],
        out_specs=pl.BlockSpec((tm, tn), lambda i, j, k: (i, j)),
        scratch_shapes=[pltpu.VMEM((tm, tn), jnp.float32),
                        pltpu.VMEM((tm, tn), jnp.float32)],
        compiler_params=_cparams("parallel", "parallel", "arbitrary"),
    )(x2, w1, w3)


# ---------------------------------------------------------------------------
# Generic tiled matmul (optionally with fused residual add).
# ---------------------------------------------------------------------------
def _matmul_kernel(x_ref, w_ref, o_ref, acc_ref):
    @pl.when(pl.program_id(2) == 0)
    def _init():
        acc_ref[...] = jnp.zeros_like(acc_ref)
    acc_ref[...] += jnp.dot(x_ref[...], w_ref[...],
                            preferred_element_type=jnp.float32)

    @pl.when(pl.program_id(2) == pl.num_programs(2) - 1)
    def _done():
        o_ref[...] = acc_ref[...].astype(o_ref.dtype)


def _matmul_res_kernel(x_ref, w_ref, r_ref, o_ref, acc_ref):
    @pl.when(pl.program_id(2) == 0)
    def _init():
        acc_ref[...] = jnp.zeros_like(acc_ref)
    acc_ref[...] += jnp.dot(x_ref[...], w_ref[...],
                            preferred_element_type=jnp.float32)

    @pl.when(pl.program_id(2) == pl.num_programs(2) - 1)
    def _done():
        o_ref[...] = (acc_ref[...]
                      + r_ref[...].astype(jnp.float32)).astype(o_ref.dtype)


def matmul(x2, w, tm, tn, tk, residual=None, out_dtype=None):
    M, K = x2.shape
    N = w.shape[1]
    out_dtype = out_dtype if out_dtype is not None else x2.dtype
    grid = (M // tm, N // tn, K // tk)
    in_specs = [pl.BlockSpec((tm, tk), lambda i, j, k: (i, k)),
                pl.BlockSpec((tk, tn), lambda i, j, k: (k, j))]
    args = [x2, w]
    kern = _matmul_kernel
    if residual is not None:
        in_specs.append(pl.BlockSpec((tm, tn), lambda i, j, k: (i, j)))
        args.append(residual)
        kern = _matmul_res_kernel
    return pl.pallas_call(
        kern,
        out_shape=jax.ShapeDtypeStruct((M, N), out_dtype),
        grid=grid,
        in_specs=in_specs,
        out_specs=pl.BlockSpec((tm, tn), lambda i, j, k: (i, j)),
        scratch_shapes=[pltpu.VMEM((tm, tn), jnp.float32)],
        compiler_params=_cparams("parallel", "parallel", "arbitrary"),
    )(*args)


# ---------------------------------------------------------------------------
# RoPE tables + weight preparation (one-time, wrapper side).
# ---------------------------------------------------------------------------
def make_rope_tables(S, hd, theta=10000.0):
    inv_freq = 1.0 / (theta ** (jnp.arange(0, hd, 2, dtype=jnp.float32) / hd))
    ang = jnp.outer(jnp.arange(S, dtype=jnp.float32), inv_freq)  # (S, hd/2)
    cos, sin = jnp.cos(ang), jnp.sin(ang)
    cos_h = jnp.concatenate([cos, cos], axis=-1)                 # (S, hd)
    sin_h = jnp.concatenate([-sin, sin], axis=-1)                # (S, hd)
    return cos, sin, cos_h, sin_h


def prepare_layer_params(lp, H, KVH, hd):
    """De-interleave q/k head columns (so in-kernel RoPE is a rotate-half) and
    fuse wq|wk|wv into a single weight.  Scores are permutation-invariant, so
    the result matches the interleaved-pair reference exactly."""
    D = lp["wq"].shape[0]
    perm = jnp.concatenate([jnp.arange(0, hd, 2), jnp.arange(1, hd, 2)])
    wq_d = lp["wq"].reshape(D, H, hd)[:, :, perm].reshape(D, H * hd)
    wk_d = lp["wk"].reshape(D, KVH, hd)[:, :, perm].reshape(D, KVH * hd)
    w_qkv = jnp.concatenate([wq_d, wk_d, lp["wv"]], axis=1)
    return dict(
        w_qkv=w_qkv.astype(ACT_DTYPE),
        wo=lp["wo"].astype(ACT_DTYPE),
        w1=lp["w1"].astype(ACT_DTYPE),
        w2=lp["w2"].astype(ACT_DTYPE),
        w3=lp["w3"].astype(ACT_DTYPE),
        attn_norm=lp["attn_norm"].reshape(1, D),
        ffn_norm=lp["ffn_norm"].reshape(1, D),
    )


# ---------------------------------------------------------------------------
# Full transformer forward (prefill) built from the Pallas kernels.
# ---------------------------------------------------------------------------
def mistral_forward_pallas(x, layers_k, final_norm_row, w_out, cfg):
    B, S, D = x.shape
    H, KVH, hd = cfg["n_heads"], cfg["n_kv_heads"], cfg["head_dim"]
    eps = cfg["norm_eps"]
    scale = hd ** -0.5
    _, _, cos_h, sin_h = make_rope_tables(S, hd)
    cos_q, sin_q = cos_h * scale, sin_h * scale     # fold softmax scale into q

    n_qkv = (H + 2 * KVH) * hd
    hidden = layers_k[0]["w1"].shape[1]
    V = w_out.shape[1]

    tm = _pick_tile(S, 256)
    tk_d = _pick_tile(D, 512)
    tn_qkv = _pick_tile(n_qkv, 256)
    tq = _pick_tile(S, 256)
    tkv = _pick_tile(S, 256)
    tn_d = _pick_tile(D, 256)
    tn_h = _pick_tile(hidden, 256)
    tk_h = _pick_tile(hidden, 512)
    tn_v = _pick_tile(V, 256)
    kpt = max(1, min(H, 512 // hd))
    while H % kpt:
        kpt -= 1
    assert S % tm == 0 and tn_qkv % hd == 0 and H % kpt == 0

    h = x.reshape(B * S, D)
    for lp in layers_k:
        xn = rmsnorm(h, lp["attn_norm"], eps, tm)
        qkv4 = qkv_proj(xn, lp["w_qkv"], B, S, hd, tm, tn_qkv, tk_d)
        attn4 = flash_attention(qkv4, cos_q, sin_q, cos_h, sin_h,
                                H, KVH, cfg["sliding_window"], tq, tkv)
        h = attn_out_proj(attn4, lp["wo"], h, tm, tn_d, kpt)
        hn = rmsnorm(h, lp["ffn_norm"], eps, tm)
        g = ffn_gate(hn, lp["w1"], lp["w3"], tm, tn_h, tk_d)
        h = matmul(g, lp["w2"], tm, tn_d, tk_h, residual=h)

    hn = rmsnorm(h, final_norm_row, eps, tm)
    logits = matmul(hn, w_out, tm, tn_v, tk_d, out_dtype=jnp.float32)
    return logits.reshape(B, S, V)


# ---------------------------------------------------------------------------
# Pure-JAX f32 reference mirroring the PyTorch module.
# ---------------------------------------------------------------------------
def mistral_forward_reference(x, layers_raw, final_norm, w_out, cfg):
    B, S, D = x.shape
    H, KVH, hd = cfg["n_heads"], cfg["n_kv_heads"], cfg["head_dim"]
    rep = H // KVH
    eps = cfg["norm_eps"]
    scale = hd ** -0.5
    cos, sin, _, _ = make_rope_tables(S, hd)

    ii = jnp.arange(S)[:, None]
    jj = jnp.arange(S)[None, :]
    allowed = (jj <= ii) & (jj >= ii - cfg["sliding_window"])
    mask = jnp.where(allowed, 0.0, -1e9).astype(jnp.float32)

    def rms(v, w):
        ms = jnp.mean(v * v, axis=-1, keepdims=True)
        return v * jax.lax.rsqrt(ms + eps) * w

    def rope(t):  # (B, S, nh, hd) interleaved complex pairs
        tr = t.reshape(*t.shape[:-1], hd // 2, 2)
        re, im = tr[..., 0], tr[..., 1]
        c = cos[None, :, None, :]
        s = sin[None, :, None, :]
        out_re = re * c - im * s
        out_im = re * s + im * c
        return jnp.stack([out_re, out_im], axis=-1).reshape(t.shape)

    h = x.astype(jnp.float32)
    for lp in layers_raw:
        xn = rms(h, lp["attn_norm"])
        xq = (xn @ lp["wq"]).reshape(B, S, H, hd)
        xk = (xn @ lp["wk"]).reshape(B, S, KVH, hd)
        xv = (xn @ lp["wv"]).reshape(B, S, KVH, hd)
        xq, xk = rope(xq), rope(xk)
        key = jnp.repeat(xk, rep, axis=2)
        val = jnp.repeat(xv, rep, axis=2)
        q = jnp.transpose(xq, (0, 2, 1, 3))
        k = jnp.transpose(key, (0, 2, 1, 3))
        v = jnp.transpose(val, (0, 2, 1, 3))
        s = jnp.einsum("bhqd,bhkd->bhqk", q, k) * scale + mask
        p = jax.nn.softmax(s, axis=-1)
        o = jnp.einsum("bhqk,bhkd->bhqd", p, v)
        o = jnp.transpose(o, (0, 2, 1, 3)).reshape(B, S, H * hd)
        h = h + o @ lp["wo"]
        hn = rms(h, lp["ffn_norm"])
        gate = jax.nn.silu(hn @ lp["w1"]) * (hn @ lp["w3"])
        h = h + gate @ lp["w2"]
    hn = rms(h, final_norm)
    return hn @ w_out


# ---------------------------------------------------------------------------
if __name__ == "__main__":
    # Small, ModelArgs-consistent shapes (head_dim matches the default 64).
    B, S = 2, 8
    dim = 32
    n_heads, n_kv_heads, head_dim = 4, 2, 64     # GQA: repeats = 2
    hidden_dim = 64
    n_layers = 2
    vocab = 64
    sliding_window = 16
    norm_eps = 1e-5
    cfg = dict(n_heads=n_heads, n_kv_heads=n_kv_heads, head_dim=head_dim,
               sliding_window=sliding_window, norm_eps=norm_eps)

    key = jax.random.PRNGKey(0)

    def linear_weight(k, fan_in, fan_out):
        bound = 1.0 / math.sqrt(fan_in)
        # stored as (in, out) so y = x @ w  (== x @ W_torch.T)
        return jax.random.uniform(k, (fan_in, fan_out), jnp.float32,
                                  -bound, bound)

    def bf(v):  # snap to bf16 grid so kernel & reference use identical weights
        return v.astype(ACT_DTYPE).astype(jnp.float32)

    def make_layer(k):
        ks = jax.random.split(k, 9)
        return dict(
            wq=bf(linear_weight(ks[0], dim, n_heads * head_dim)),
            wk=bf(linear_weight(ks[1], dim, n_kv_heads * head_dim)),
            wv=bf(linear_weight(ks[2], dim, n_kv_heads * head_dim)),
            wo=bf(linear_weight(ks[3], n_heads * head_dim, dim)),
            w1=bf(linear_weight(ks[4], dim, hidden_dim)),
            w2=bf(linear_weight(ks[5], hidden_dim, dim)),
            w3=bf(linear_weight(ks[6], dim, hidden_dim)),
            attn_norm=1.0 + 0.05 * jax.random.normal(ks[7], (dim,), jnp.float32),
            ffn_norm=1.0 + 0.05 * jax.random.normal(ks[8], (dim,), jnp.float32),
        )

    key, kx, kn, ko, *kl = jax.random.split(key, 4 + n_layers)
    layers_raw = [make_layer(k) for k in kl]
    final_norm = 1.0 + 0.05 * jax.random.normal(kn, (dim,), jnp.float32)
    w_out_raw = bf(linear_weight(ko, dim, vocab))

    x_f32 = jax.random.normal(kx, (B, S, dim), dtype=jnp.float32)
    x_bf = x_f32.astype(ACT_DTYPE)

    layers_k = [prepare_layer_params(lp, n_heads, n_kv_heads, head_dim)
                for lp in layers_raw]

    out = mistral_forward_pallas(x_bf, layers_k, final_norm.reshape(1, dim),
                                 w_out_raw.astype(ACT_DTYPE), cfg)
    out = jax.block_until_ready(out)

    ref = mistral_forward_reference(x_bf.astype(jnp.float32), layers_raw,
                                    final_norm, w_out_raw, cfg)
    ref = jax.block_until_ready(ref)

    assert out.shape == (B, S, vocab)
    max_diff = float(jnp.max(jnp.abs(out - ref)))
    assert jnp.allclose(out, ref, atol=4e-2, rtol=4e-2), max_diff

    print("KERNEL_OK")
</pallas_src>

<mosaic_0001>
module attributes {stable_mosaic.version = 11 : i64} {
  func.func @_rmsnorm_kernel(%arg0: i32, %arg1: memref<8x32xbf16, #tpu.memory_space<vmem>>, %arg2: memref<1x32xf32, #tpu.memory_space<vmem>>, %arg3: memref<8x32xbf16, #tpu.memory_space<vmem>>) attributes {dimension_semantics = [#tpu.dimension_semantics<parallel>], iteration_bounds = array<i64: 2>, scalar_prefetch = 0 : i64, scratch_operands = 0 : i64, tpu.core_type = #tpu.core_type<tc>, window_params = [{transform_indices = @transform_0, window_bounds = array<i64: 8, 32>}, {pipeline_mode = #tpu.pipeline_mode<synchronous>, transform_indices = @transform_1, window_bounds = array<i64: 1, 32>}, {transform_indices = @transform_2, window_bounds = array<i64: 8, 32>}]} {
    %c0 = arith.constant 0 : index
    %c0_0 = arith.constant 0 : index
    %0 = vector.load %arg1[%c0, %c0_0] : memref<8x32xbf16, #tpu.memory_space<vmem>>, vector<8x32xbf16>
    %1 = arith.extf %0 : vector<8x32xbf16> to vector<8x32xf32>
    %2 = arith.mulf %1, %1 : vector<8x32xf32>
    %cst = arith.constant dense<0.000000e+00> : vector<8xf32>
    %3 = vector.multi_reduction <add>, %2, %cst [1] : vector<8x32xf32> to vector<8xf32>
    %4 = vector.shape_cast %3 : vector<8xf32> to vector<8x1xf32>
    %cst_1 = arith.constant 3.200000e+01 : f32
    %5 = vector.broadcast %cst_1 : f32 to vector<8x1xf32>
    %6 = arith.divf %4, %5 : vector<8x1xf32>
    %cst_2 = arith.constant 9.99999974E-6 : f32
    %7 = vector.broadcast %cst_2 : f32 to vector<8x1xf32>
    %8 = arith.addf %6, %7 : vector<8x1xf32>
    %9 = math.rsqrt %8 : vector<8x1xf32>
    %10 = vector.broadcast %9 : vector<8x1xf32> to vector<8x32xf32>
    %11 = arith.mulf %1, %10 : vector<8x32xf32>
    %c0_3 = arith.constant 0 : index
    %c0_4 = arith.constant 0 : index
    %12 = vector.load %arg2[%c0_3, %c0_4] : memref<1x32xf32, #tpu.memory_space<vmem>>, vector<1x32xf32>
    %13 = vector.broadcast %12 : vector<1x32xf32> to vector<8x32xf32>
    %14 = arith.mulf %11, %13 : vector<8x32xf32>
    %15 = arith.truncf %14 : vector<8x32xf32> to vector<8x32xbf16>
    %c0_5 = arith.constant 0 : index
    %c0_6 = arith.constant 0 : index
    %16 = vector.load %arg3[%c0_5, %c0_6] : memref<8x32xbf16, #tpu.memory_space<vmem>>, vector<8x32xbf16>
    tpu.vector_store %arg3[%c0_5, %c0_6], %15 {strides = array<i32>} : memref<8x32xbf16, #tpu.memory_space<vmem>>, vector<8x32xbf16>,
    return
  }
  func.func @transform_0(%arg0: i32) -> (i32, i32) {
    %c0_i32 = arith.constant 0 : i32
    %c0_i32_0 = arith.constant 0 : i32
    return %arg0, %c0_i32 : i32, i32
  }
  func.func @transform_1(%arg0: i32) -> (i32, i32) {
    %c0_i32 = arith.constant 0 : i32
    %c0_i32_0 = arith.constant 0 : i32
    %c0_i32_1 = arith.constant 0 : i32
    return %c0_i32, %c0_i32_0 : i32, i32
  }
  func.func @transform_2(%arg0: i32) -> (i32, i32) {
    %c0_i32 = arith.constant 0 : i32
    %c0_i32_0 = arith.constant 0 : i32
    return %arg0, %c0_i32 : i32, i32
  }
}

</mosaic_0001>

<llo_original>
// kernel: tpu_custom_call.1
$region0: #{tpu_custom_call.1}
  #allocation0 [shape = 'u32[]', space=smem, size = 0x4, offset = 0x4, fixed_abs, tag = 'smem constant byte address 0x4 - core index']
  #allocation1 [shape = 'u32[144,128]{1,0:T(1,128)}', space=vmem, size = 0x12000, scoped, tag = 'internal scratch']
  %s0 = inlined_call_operand.hbm [shape: bf16[16,32], index: 0, kind: input, shape index: {}]
  %s1 = inlined_call_operand.vmem [shape: f32[1,32], index: 1, kind: input, shape index: {}]
  %s2 = inlined_call_operand.hbm [shape: bf16[16,32], index: 2, kind: output, shape index: {}]
  %s3 = sld [smem:[#allocation0]]
  $region45: #{tpu_custom_call.1} parent=0
    _
  %s5 = ssub.s32 1, %s3
  %s6 = scalar_select 0, %s5, %s3
  $region1: #{tpu_custom_call.1} parent=0
    #allocation2 [shape = 'u8[4096]{0}', space=vmem, size = 0x1000, scoped, tag = 'input window, operand 0']
    #allocation3 [shape = 's32[2]{0}', space=sflag, size = 0x8, scoped, tag = 'scoped memory for tpu_custom_call.1']
    #allocation4 [shape = 's32[2]{0}', space=sflag, size = 0x8, scoped, tag = 'scoped memory for tpu_custom_call.1']
    #allocation5 [shape = 'u8[4096]{0}', space=vmem, size = 0x1000, scoped, tag = 'output window, operand 0']
    %7 = vsyncpa [#allocation3], 0
    %s8 = scalar_lea.sflag [#allocation3], 1
    %9 = vsyncpa %s8, 0
    %10 = vsyncpa [#allocation4], 0
    %s11 = scalar_lea.sflag [#allocation4], 1
    %12 = vsyncpa %s11, 0
    loop: start=0, step=1, limit=4
    $region2: #{tpu_custom_call.1} parent=1 // loop_pre_header
      _
    $region3: #{tpu_custom_call.1} parent=1 // loop_header
      %s14 = sphi 0, %s18
      %p15 = scmp.ge.s32.totalorder %s14, 4
      %s24 = sphi 0, %s26
      %s27 = sphi 0, %s24
      %s28 = sphi 0, %s27
      %s44 = sphi 0, %s28
      %s48 = sphi 0, %s48
      %s50 = sphi 0, %s48
      %s51 = sphi 0, %s50
      %s65 = sphi 0, %s51
      %s71 = sphi 0, %s73
      %s74 = sphi 0, %s71
      %s75 = sphi 0, %s74
      %s91 = sphi 0, %s75
    $region4: #{tpu_custom_call.1} parent=1 // loop_header_branch
      %17 = sbr.rel (%p15) target = $region8
    $region5: #{tpu_custom_call.1} parent=1 // loop_body
      %s19 = ssub.s32 %s14, 1
      %s20 = ssub.s32 %s14, 2
      %s21 = sadd.s32 %s14, 1
      %s22 = ssub.s32 %s14, %s21
      %p23 = scmp.eq.s32.totalorder %s22, 0
      %s25 = sadd.s32 %s24, 1
      %s26 = scalar_select %p23, %s24, %s25
      %p29 = pneg %p23
      %p30 = scmp.eq.s32.totalorder %s14, 1
      %p31 = por %p29, %p30
      %p32 = scmp.ne.s32.totalorder %s24, %s27
      %p33 = scmp.eq.s32.totalorder %s14, 0
      %p34 = por %p32, %p33
      %p35 = scmp.ne.s32.totalorder %s24, %s27
      %p36 = scmp.eq.s32.totalorder %s19, 1
      %p37 = por %p35, %p36
      %p38 = scmp.ne.s32.totalorder %s27, %s28
      %p39 = scmp.eq.s32.totalorder %s19, 0
      %p40 = por %p38, %p39
      %p41 = scmp.ne.s32.totalorder %s27, %s28
      %p42 = scmp.eq.s32.totalorder %s20, 1
      %p43 = por %p41, %p42
      %p45 = scmp.ne.s32.totalorder %s28, %s44
      %p46 = scmp.eq.s32.totalorder %s20, 0
      %p47 = por %p45, %p46
      %s49 = sadd.s32 %s48, 1
      %p52 = scmp.eq.s32.totalorder %s14, 1
      %p53 = scmp.ne.s32.totalorder %s48, %s50
      %p54 = scmp.eq.s32.totalorder %s14, 0
      %p55 = por %p53, %p54
      %p56 = scmp.ne.s32.totalorder %s48, %s50
      %p57 = scmp.eq.s32.totalorder %s19, 1
      %p58 = por %p56, %p57
      %p59 = scmp.ne.s32.totalorder %s50, %s51
      %p60 = scmp.eq.s32.totalorder %s19, 0
      %p61 = por %p59, %p60
      %p62 = scmp.ne.s32.totalorder %s50, %s51
      %p63 = scmp.eq.s32.totalorder %s20, 1
      %p64 = por %p62, %p63
      %p66 = scmp.ne.s32.totalorder %s51, %s65
      %p67 = scmp.eq.s32.totalorder %s20, 0
      %p68 = por %p66, %p67
      %s69 = ssub.s32 %s14, %s21
      %p70 = scmp.eq.s32.totalorder %s69, 0
      %s72 = sadd.s32 %s71, 1
      %s73 = scalar_select %p70, %s71, %s72
      %p76 = pneg %p70
      %p77 = scmp.eq.s32.totalorder %s14, 1
      %p78 = por %p76, %p77
      %p79 = scmp.ne.s32.totalorder %s71, %s74
      %p80 = scmp.eq.s32.totalorder %s14, 0
      %p81 = por %p79, %p80
      %p82 = scmp.ne.s32.totalorder %s71, %s74
      %p83 = scmp.eq.s32.totalorder %s19, 1
      %p84 = por %p82, %p83
      %p85 = scmp.ne.s32.totalorder %s74, %s75
      %p86 = scmp.eq.s32.totalorder %s19, 0
      %p87 = por %p85, %p86
      %p88 = scmp.ne.s32.totalorder %s74, %s75
      %p89 = scmp.eq.s32.totalorder %s20, 1
      %p90 = por %p88, %p89
      %p92 = scmp.ne.s32.totalorder %s75, %s91
      %p93 = scmp.eq.s32.totalorder %s20, 0
      %p94 = por %p92, %p93
      %p95 = scmp.le.s32.totalorder 1, %s14
      %p96 = scmp.lt.s32.totalorder %s14, 3
      %p97 = pnand %p95, %p96
      %p98 = pneg %p97
      // Predicated region
      $region9: #{tpu_custom_call.1} parent=5 // pred_check
        _
      $region10: #{tpu_custom_call.1} parent=5 // pred_check_branch
        %100 = sbr.rel (%p97) target = $region12
      $region11: #{tpu_custom_call.1} parent=5 // pred_region
        %s101 = ssub.s32 %s14, 1
        // Predicated region
        $region13: #{tpu_custom_call.1} parent=11 // pred_check
          %p102 = pneg %p61
        $region14: #{tpu_custom_call.1} parent=11 // pred_check_branch
          %104 = sbr.rel (%p102) target = $region16
        $region15: #{tpu_custom_call.1} parent=11 // pred_region
          _
        $region16: #{tpu_custom_call.1} parent=11 // pred_fallthru
          _
      $region12: #{tpu_custom_call.1} parent=5 // pred_fallthru
        _
      %p105 = scmp.lt.s32.totalorder %s14, 2
      // Predicated region
      $region17: #{tpu_custom_call.1} parent=5 // pred_check
        %p106 = pneg %p105
      $region18: #{tpu_custom_call.1} parent=5 // pred_check_branch
        %108 = sbr.rel (%p106) target = $region20
      $region19: #{tpu_custom_call.1} parent=5 // pred_region
        // Predicated region
        $region21: #{tpu_custom_call.1} parent=19 // pred_check
          %p109 = pneg %p34
        $region22: #{tpu_custom_call.1} parent=19 // pred_check_branch
          %111 = sbr.rel (%p109) target = $region24
        $region23: #{tpu_custom_call.1} parent=19 // pred_region
          %s112 = sand.u32 %s24, 1
          %s113 = scalar_lea.sflag [#allocation3], %s112
          %s114 = sand.u32 %s24, 1
          %s115 = smul.addr %s114, 4
          %s116 = scalar_lea.vmem [#allocation2], %s115
          %s118 = ssub.s32 64, 64
          %119 = vsyncadd %s113, %s118
          %s120 = smul.addr %s14, 64
          %s121 = scalar_lea.hbm %s0, %s120
          %s123 = sshll.u32 %s116, 4
          %s124 = int_to_ptr.vmem [resolvable:$true] %s123
          %126 = dma.hbm_to_vmem [thread:$0]  %s121, 64, %s124, %s113
        $region24: #{tpu_custom_call.1} parent=19 // pred_fallthru
          _
      $region20: #{tpu_custom_call.1} parent=5 // pred_fallthru
        _
      %p127 = scmp.le.s32.totalorder 1, %s14
      %p128 = scmp.lt.s32.totalorder %s14, 3
      %p129 = pnand %p127, %p128
      %p130 = pneg %p129
      // Predicated region
      $region25: #{tpu_custom_call.1} parent=5 // pred_check
        _
      $region26: #{tpu_custom_call.1} parent=5 // pred_check_branch
        %132 = sbr.rel (%p129) target = $region28
      $region27: #{tpu_custom_call.1} parent=5 // pred_region
        %s133 = ssub.s32 %s14, 1
        %s134 = sand.u32 %s27, 1
        %s135 = scalar_lea.sflag [#allocation3], %s134
        %s136 = sand.u32 %s27, 1
        %s137 = smul.addr %s136, 4
        %s138 = scalar_lea.vmem [#allocation2], %s137
        // Predicated region
        $region29: #{tpu_custom_call.1} parent=27 // pred_check
          %p139 = pneg %p40
        $region30: #{tpu_custom_call.1} parent=27 // pred_check_branch
          %141 = sbr.rel (%p139) target = $region32
        $region31: #{tpu_custom_call.1} parent=27 // pred_region
          %142 = dma.done %s135, 64
        $region32: #{tpu_custom_call.1} parent=27 // pred_fallthru
          _
        %s143 = sand.u32 %s27, 1
        %s144 = scalar_lea.sflag [#allocation3], %s143
        %s145 = sand.u32 %s27, 1
        %s146 = smul.addr %s145, 4
        %s147 = scalar_lea.vmem [#allocation2], %s146
        %p148 = pneg %p40
        %p149 = pneg %p37
        %p150 = pneg %p61
        %p151 = pneg %p58
        %p152 = pneg %p87
        %p153 = pneg %p84
        %s154 = sand.u32 %s74, 1
        %s155 = scalar_lea.sflag [#allocation4], %s154
        %s156 = sand.u32 %s74, 1
        %s157 = smul.addr %s156, 4
        %s158 = scalar_lea.vmem [#allocation5], %s157
        %v159 = vld [vmem:[%s138] sm:$0xf]
        %v160 = vunpack.c.l.bf16 %v159
        %v161 = vmul.f32 %v160, %v160
        %vm162 = vcmask 261120
        %v163 = vsel %vm162, %v161, 0.0
        %164 = vadd.xlane.f32.xlu0 %v163
        %v165 = vpop.xlane.xlu0 %164
        %v166 = vrcp.pop 32.0
        %v167 = vmul.f32 %v165, %v166
        %v168 = vadd.f32 %v167, 1e-05
        %v169 = vrsqrt.pop %v168
        %v170 = vmul.f32 %v160, %v169
        %v171 = vld [vmem:[%s1] sm:$0x1]
        %v173 = vlaneseq
        %v174 = vshrl.u32 %v173, 7
        %v175 = vsub.s32 0, %v174
        %v176 = vrot.slane %v171, %v175
        %v178 = vmul.f32 %v170, %v176
        %v179 = vpack.c.bf16 %v178, %v178
        %vm180 = vcmask 257024
        %181 = vst.msk [vmem:[%s158] sm:$0xf] %vm180, %v179
        %s182 = sand.u32 %s74, 1
        %s183 = scalar_lea.sflag [#allocation4], %s182
        %s184 = sand.u32 %s74, 1
        %s185 = smul.addr %s184, 4
        %s186 = scalar_lea.vmem [#allocation5], %s185
        // Predicated region
        $region33: #{tpu_custom_call.1} parent=27 // pred_check
          %p187 = pneg %p84
        $region34: #{tpu_custom_call.1} parent=27 // pred_check_branch
          %189 = sbr.rel (%p187) target = $region36
        $region35: #{tpu_custom_call.1} parent=27 // pred_region
          %s191 = ssub.s32 64, 64
          %192 = vsyncadd %s183, %s191
          %s193 = smul.addr %s19, 64
          %s194 = scalar_lea.hbm %s2, %s193
          %s196 = sshll.u32 %s186, 4
          %s197 = int_to_ptr.vmem [resolvable:$true] %s196
          %199 = dma.vmem_to_hbm [thread:$0]  %s197, 64, %s194, %s183
        $region36: #{tpu_custom_call.1} parent=27 // pred_fallthru
          _
      $region28: #{tpu_custom_call.1} parent=5 // pred_fallthru
        _
      %p200 = scmp.le.s32.totalorder 2, %s14
      // Predicated region
      $region37: #{tpu_custom_call.1} parent=5 // pred_check
        %p201 = pneg %p200
      $region38: #{tpu_custom_call.1} parent=5 // pred_check_branch
        %203 = sbr.rel (%p201) target = $region40
      $region39: #{tpu_custom_call.1} parent=5 // pred_region
        %s204 = ssub.s32 %s14, 2
        // Predicated region
        $region41: #{tpu_custom_call.1} parent=39 // pred_check
          %p205 = pneg %p90
        $region42: #{tpu_custom_call.1} parent=39 // pred_check_branch
          %207 = sbr.rel (%p205) target = $region44
        $region43: #{tpu_custom_call.1} parent=39 // pred_region
          %s208 = sand.u32 %s75, 1
          %s209 = scalar_lea.sflag [#allocation4], %s208
          %s210 = sand.u32 %s75, 1
          %s211 = smul.addr %s210, 4
          %s212 = scalar_lea.vmem [#allocation5], %s211
          %213 = dma.done %s209, 64
        $region44: #{tpu_custom_call.1} parent=39 // pred_fallthru
          _
      $region40: #{tpu_custom_call.1} parent=5 // pred_fallthru
        _
    $region6: #{tpu_custom_call.1} parent=1 // loop_footer
      %s18 = sadd.s32 1, %s14
    $region7: #{tpu_custom_call.1} parent=1 // loop_footer_branch
      %13 = sbr.rel target = $region3
    $region8: #{tpu_custom_call.1} parent=1 // loop_exit
      _
    %214 = vsyncpa [#allocation3], 1
    %s215 = scalar_lea.sflag [#allocation3], 1
    %216 = vsyncpa %s215, 1
    %217 = vsyncpa [#allocation4], 1
    %s218 = scalar_lea.sflag [#allocation4], 1
    %219 = vsyncpa %s218, 1

</llo_original>
